<compile_context>
chip_gen: v7x
topology: tpu7x:2x2x1
jax: 0.10.0
libtpu: 0.0.40
codegen_flags: <defaults>
</compile_context>

<pallas_src>
import jax
import jax.numpy as jnp
from jax import lax
from jax.experimental import pallas as pl
from jax.experimental.pallas import tpu as pltpu


LANE = 128


def _round_up(v, m):
    return ((v + m - 1) // m) * m


# ----------------------------- kernels --------------------------------------


def _biaffine_kernel_fullj(x_ref, w_ref, y_ref, o_ref):
    # x_ref: [1, TSi, Dx]  w_ref: [1, Dx, Dy]  y_ref: [1, SP, Dy]
    # o_ref: [1, 1, TSi, SP]
    t = jnp.dot(x_ref[0], w_ref[0], preferred_element_type=jnp.float32)
    t = t.astype(y_ref.dtype)                      # no-op for f32 compute
    # s = t @ y^T expressed as a contraction over y's last dim (MXU-native).
    s = lax.dot_general(t, y_ref[0],
                        dimension_numbers=(((1,), (1,)), ((), ())),
                        preferred_element_type=jnp.float32)
    o_ref[0, 0] = s.astype(o_ref.dtype)


def _biaffine_kernel_tiledj(x_ref, w_ref, y_ref, o_ref, t_ref):
    # grid = (o, b, i, j), j innermost and "arbitrary".
    # x_ref: [1, TSi, Dx]  w_ref: [1, Dx, Dy]  y_ref: [1, TSj, Dy]
    # o_ref: [1, 1, TSi, TSj]  t_ref: [TSi, Dy] scratch in the compute dtype
    j = pl.program_id(3)

    @pl.when(j == 0)
    def _():
        # First matmul computed once per (o, b, i); downcast ONCE here so no
        # per-j VPU cast / f32 reload sits under the MXU.
        t = jnp.dot(x_ref[0], w_ref[0], preferred_element_type=jnp.float32)
        t_ref[...] = t.astype(t_ref.dtype)

    s = lax.dot_general(t_ref[...], y_ref[0],
                        dimension_numbers=(((1,), (1,)), ((), ())),
                        preferred_element_type=jnp.float32)
    o_ref[0, 0] = s.astype(o_ref.dtype)


# ----------------------------- wrapper ---------------------------------------


def _prep_activations(x, n_in, add_bias, D, SP, S):
    """Fused bias-append + feature/seq zero-pad: [B, S, n_in] -> [B, SP, D]."""
    B = x.shape[0]
    out = jnp.zeros((B, SP, D), x.dtype)
    out = out.at[:, :S, :n_in].set(x)
    if add_bias:
        # bias column lives at feature index n_in; padded seq rows stay zero,
        # so padded scores are exactly zero and get sliced away afterwards.
        out = out.at[:, :S, n_in].set(1.0)
    return out


def _vmem_capacity_bytes():
    try:
        return int(pltpu.get_tpu_info().vmem_capacity_bytes)
    except Exception:
        return 64 << 20          # conservative fallback (v7x per-core VMEM)


def biaffine(x, y, weight, *, bias_x=True, bias_y=True,
             max_tile=512, compute_dtype=None, out_dtype=None,
             trim_padding=True):
    """Pallas implementation of BiAffine.forward.

    compute_dtype: e.g. jnp.bfloat16 to halve x/y/W HBM traffic and feed the
        MXU at native rate (recommended on v5e); accumulation stays f32.
    out_dtype:     e.g. jnp.bfloat16 to halve score writeback on HBM-bound
        v5e/v6e (less critical on v7x).
    trim_padding:  set False to receive the zero-padded [SP, SP] scores and
        avoid an extra full-output HBM copy when S is not a 128 multiple
        (padded rows/cols are exactly zero).
    """
    B, S, n_in = x.shape
    n_out, dx, dy = weight.shape
    assert dx == n_in + int(bias_x) and dy == n_in + int(bias_y)

    in_dtype = x.dtype
    cdtype = jnp.dtype(in_dtype) if compute_dtype is None else jnp.dtype(compute_dtype)
    odtype = jnp.dtype(in_dtype) if out_dtype is None else jnp.dtype(out_dtype)
    if compute_dtype is not None:
        x = x.astype(cdtype)
        y = y.astype(cdtype)
        weight = weight.astype(cdtype)

    Dx = _round_up(dx, LANE)
    Dy = _round_up(dy, LANE)
    SP128 = _round_up(S, LANE)

    csize = cdtype.itemsize
    osize = odtype.itemsize

    cap = _vmem_capacity_bytes()           # real per-core VMEM (64 MiB on v7x)
    budget = int(0.70 * cap)               # tile-selection budget

    # --- i-tile: largest tile whose extra zero-row padding stays <= ~25% ----
    max_tile = max(LANE, _round_up(max_tile, LANE))
    cands = sorted({min(c, SP128) for c in (max_tile, 384, 256, LANE)
                    if c <= max_tile}, reverse=True)
    TS_i = LANE
    for cand in cands:
        if _round_up(S, cand) - SP128 <= SP128 // 4:
            TS_i = cand
            break
    SP = _round_up(S, TS_i)

    # v7x has 2 TensorCores sharded over "parallel" grid axes: guarantee >= 2
    # units of parallel work for small-batch, single-head calls.
    if B * n_out == 1 and SP // TS_i == 1 and SP % (2 * LANE) == 0:
        TS_i = SP // 2
    n_i = SP // TS_i

    # --- j-tile: as wide as VMEM allows; ideally the whole y slab -----------
    def footprint(ts_j):
        f = 2 * csize * (TS_i * Dx + Dx * Dy + ts_j * Dy)   # double-buffered ins
        f += 2 * osize * TS_i * ts_j                         # double-buffered out
        if ts_j != SP:
            f += csize * TS_i * Dy                           # t scratch (tiled path)
        return f

    ts_j_cands = [SP] + [k * LANE for k in range(SP // LANE - 1, 0, -1)
                         if SP % (k * LANE) == 0]
    TS_j = ts_j_cands[-1]
    for cand in ts_j_cands:
        if footprint(cand) <= budget:
            TS_j = cand
            break
    full_j = (TS_j == SP)
    n_j = SP // TS_j

    # TODO(synk): for very large n_in (weight slab approaching the VMEM budget)
    # add a K-tiling reduction axis over Dx with an f32 accumulator.
    # TODO(synk): for label biaffines (n_out large, Dx=Dy=128) group G heads
    # into one (Dx, G*Dy) weight block so the first matmul has N >= 512.

    xp = _prep_activations(x, n_in, bias_x, Dx, SP, S)
    yp = _prep_activations(y, n_in, bias_y, Dy, SP, S)
    wp = jnp.pad(weight, ((0, 0), (0, Dx - dx), (0, Dy - dy)))

    # VMEM limit: actual footprint + slack, capped by the chip's REAL capacity
    # (never a hard 100 MiB, which would overflow v7x's 64 MiB per core).
    vmem_limit = int(min(max(footprint(TS_j) + (2 << 20), 16 << 20),
                         int(0.75 * cap)))

    flops = 2 * n_out * B * (SP * Dx * Dy + SP * SP * Dy)
    bytes_accessed = (n_out * B * SP * Dx * csize      # x (re-streamed per head)
                      + n_out * Dx * Dy * csize        # W (fetched once per head)
                      + n_out * B * SP * Dy * csize    # y (resident per (o, b))
                      + n_out * B * SP * SP * osize)   # scores
    cost = pl.CostEstimate(flops=int(flops), transcendentals=0,
                           bytes_accessed=int(bytes_accessed))

    if full_j:
        grid = (n_out, B, n_i)
        in_specs = [
            pl.BlockSpec((1, TS_i, Dx), lambda o, b, i: (b, i, 0)),   # x_i
            pl.BlockSpec((1, Dx, Dy),   lambda o, b, i: (o, 0, 0)),   # W_o
            pl.BlockSpec((1, SP, Dy),   lambda o, b, i: (b, 0, 0)),   # full y
        ]
        out_specs = pl.BlockSpec((1, 1, TS_i, SP),
                                 lambda o, b, i: (b, o, i, 0))
        scratch_shapes = []
        kernel = _biaffine_kernel_fullj
        semantics = ("parallel", "parallel", "parallel")
    else:
        grid = (n_out, B, n_i, n_j)
        in_specs = [
            pl.BlockSpec((1, TS_i, Dx), lambda o, b, i, j: (b, i, 0)),  # x_i
            pl.BlockSpec((1, Dx, Dy),   lambda o, b, i, j: (o, 0, 0)),  # W_o
            # TODO(synk): add pipeline_mode=pl.Buffered(3) on y if profiling
            # shows exposed y DMA at small TS_j/Dy (costs one extra TS_j*Dy).
            pl.BlockSpec((1, TS_j, Dy), lambda o, b, i, j: (b, j, 0)),  # y_j
        ]
        out_specs = pl.BlockSpec((1, 1, TS_i, TS_j),
                                 lambda o, b, i, j: (b, o, i, j))
        scratch_shapes = [pltpu.VMEM((TS_i, Dy), cdtype)]
        kernel = _biaffine_kernel_tiledj
        # j MUST stay "arbitrary": the t scratch written at j == 0 is reused
        # for j > 0 within each (o, b, i).
        semantics = ("parallel", "parallel", "parallel", "arbitrary")

    out = pl.pallas_call(
        kernel,
        out_shape=jax.ShapeDtypeStruct((B, n_out, SP, SP), odtype),
        grid_spec=pltpu.PrefetchScalarGridSpec(
            num_scalar_prefetch=0,
            grid=grid,
            in_specs=in_specs,
            out_specs=out_specs,
            scratch_shapes=scratch_shapes),
        compiler_params=pltpu.CompilerParams(
            dimension_semantics=semantics,
            vmem_limit_bytes=vmem_limit),
        cost_estimate=cost,
    )(xp, wp, yp)

    if trim_padding and SP != S:
        out = out[:, :, :S, :S]
    # torch's .squeeze(1) only drops the dim when n_out == 1.
    if n_out == 1:
        out = out[:, 0]
    return out


if __name__ == "__main__":
    # Small, deterministic setup: batch=2, seq=8, n_in=32, n_out=1, biases on.
    B, S, n_in, n_out = 2, 8, 32, 1
    bias_x = bias_y = True

    key = jax.random.PRNGKey(0)
    kx, ky, kw = jax.random.split(key, 3)
    x = jax.random.normal(kx, (B, S, n_in), dtype=jnp.float32)
    y = jax.random.normal(ky, (B, S, n_in), dtype=jnp.float32)

    # reset_parameters(): uniform(-1/sqrt(n_in + bias_x), +1/sqrt(n_in + bias_x))
    bound = 1.0 / float(n_in + int(bias_x)) ** 0.5
    weight = jax.random.uniform(
        kw, (n_out, n_in + int(bias_x), n_in + int(bias_y)),
        dtype=jnp.float32, minval=-bound, maxval=bound)

    s = biaffine(x, y, weight, bias_x=bias_x, bias_y=bias_y)
    s = jax.block_until_ready(s)

    # Pure-JAX reference for a sanity check of the kernel.
    xb = jnp.concatenate([x, jnp.ones((B, S, 1), x.dtype)], axis=-1)
    yb = jnp.concatenate([y, jnp.ones((B, S, 1), y.dtype)], axis=-1)
    ref = jnp.einsum("bsi,oij,btj->bost", xb, weight, yb)
    if n_out == 1:
        ref = ref[:, 0]
    assert s.shape == ref.shape, (s.shape, ref.shape)
    assert jnp.allclose(s, ref, atol=1e-4, rtol=1e-4)

    print("KERNEL_OK")
</pallas_src>

<mosaic_0001>
module attributes {stable_mosaic.version = 11 : i64} {
  func.func @_biaffine_kernel_fullj(%arg0: i32, %arg1: i32, %arg2: i32, %arg3: memref<1x128x128xf32, #tpu.memory_space<vmem>>, %arg4: memref<1x128x128xf32, #tpu.memory_space<vmem>>, %arg5: memref<1x128x128xf32, #tpu.memory_space<vmem>>, %arg6: memref<1x1x128x128xf32, #tpu.memory_space<vmem>>) attributes {dimension_semantics = [#tpu.dimension_semantics<parallel>, #tpu.dimension_semantics<parallel>, #tpu.dimension_semantics<parallel>], iteration_bounds = array<i64: 1, 2, 1>, scalar_prefetch = 0 : i64, scratch_operands = 0 : i64, tpu.core_type = #tpu.core_type<tc>, window_params = [{transform_indices = @transform_0, window_bounds = array<i64: 1, 128, 128>}, {transform_indices = @transform_1, window_bounds = array<i64: 1, 128, 128>}, {transform_indices = @transform_2, window_bounds = array<i64: 1, 128, 128>}, {transform_indices = @transform_3, window_bounds = array<i64: 1, 1, 128, 128>}]} {
    %c0 = arith.constant 0 : index
    %c0_0 = arith.constant 0 : index
    %c0_1 = arith.constant 0 : index
    %0 = vector.load %arg3[%c0, %c0_0, %c0_1] : memref<1x128x128xf32, #tpu.memory_space<vmem>>, vector<1x128x128xf32>
    %1 = vector.shape_cast %0 : vector<1x128x128xf32> to vector<128x128xf32>
    %c0_2 = arith.constant 0 : index
    %c0_3 = arith.constant 0 : index
    %c0_4 = arith.constant 0 : index
    %2 = vector.load %arg4[%c0_2, %c0_3, %c0_4] : memref<1x128x128xf32, #tpu.memory_space<vmem>>, vector<1x128x128xf32>
    %3 = vector.shape_cast %2 : vector<1x128x128xf32> to vector<128x128xf32>
    %cst = arith.constant dense<0.000000e+00> : vector<128x128xf32>
    %4 = tpu.matmul %1, %3, %cst {dimension_numbers = #tpu.dot_dimension_numbers<[1], [0], [0], [1], [0, 0, 1, 1], [], []>} : vector<128x128xf32>, vector<128x128xf32>, vector<128x128xf32> -> vector<128x128xf32>
    %c0_5 = arith.constant 0 : index
    %c0_6 = arith.constant 0 : index
    %c0_7 = arith.constant 0 : index
    %5 = vector.load %arg5[%c0_5, %c0_6, %c0_7] : memref<1x128x128xf32, #tpu.memory_space<vmem>>, vector<1x128x128xf32>
    %6 = vector.shape_cast %5 : vector<1x128x128xf32> to vector<128x128xf32>
    %cst_8 = arith.constant dense<0.000000e+00> : vector<128x128xf32>
    %7 = tpu.matmul %4, %6, %cst_8 {dimension_numbers = #tpu.dot_dimension_numbers<[1], [1], [0], [0], [0, 0, 1, 0], [], []>} : vector<128x128xf32>, vector<128x128xf32>, vector<128x128xf32> -> vector<128x128xf32>
    %c0_9 = arith.constant 0 : index
    %c0_10 = arith.constant 0 : index
    %c0_11 = arith.constant 0 : index
    %c0_12 = arith.constant 0 : index
    %8 = vector.load %arg6[%c0_9, %c0_10, %c0_11, %c0_12] : memref<1x1x128x128xf32, #tpu.memory_space<vmem>>, vector<1x1x128x128xf32>
    %9 = vector.shape_cast %8 : vector<1x1x128x128xf32> to vector<128x128xf32>
    %10 = vector.shape_cast %7 : vector<128x128xf32> to vector<1x1x128x128xf32>
    tpu.vector_store %arg6[%c0_9, %c0_10, %c0_11, %c0_12], %10 {strides = array<i32>} : memref<1x1x128x128xf32, #tpu.memory_space<vmem>>, vector<1x1x128x128xf32>,
    return
  }
  func.func @transform_0(%arg0: i32, %arg1: i32, %arg2: i32) -> (i32, i32, i32) {
    %c0_i32 = arith.constant 0 : i32
    %c0_i32_0 = arith.constant 0 : i32
    return %arg1, %arg2, %c0_i32 : i32, i32, i32
  }
  func.func @transform_1(%arg0: i32, %arg1: i32, %arg2: i32) -> (i32, i32, i32) {
    %c0_i32 = arith.constant 0 : i32
    %c0_i32_0 = arith.constant 0 : i32
    %c0_i32_1 = arith.constant 0 : i32
    return %arg0, %c0_i32, %c0_i32_0 : i32, i32, i32
  }
  func.func @transform_2(%arg0: i32, %arg1: i32, %arg2: i32) -> (i32, i32, i32) {
    %c0_i32 = arith.constant 0 : i32
    %c0_i32_0 = arith.constant 0 : i32
    %c0_i32_1 = arith.constant 0 : i32
    return %arg1, %c0_i32, %c0_i32_0 : i32, i32, i32
  }
  func.func @transform_3(%arg0: i32, %arg1: i32, %arg2: i32) -> (i32, i32, i32, i32) {
    %c0_i32 = arith.constant 0 : i32
    %c0_i32_0 = arith.constant 0 : i32
    return %arg1, %arg0, %arg2, %c0_i32 : i32, i32, i32, i32
  }
}

</mosaic_0001>

<llo_original>
// kernel: tpu_custom_call.1
$region0: #{tpu_custom_call.1}
  #allocation0 [shape = 'u32[]', space=smem, size = 0x4, offset = 0x4, fixed_abs, tag = 'smem constant byte address 0x4 - core index']
  #allocation1 [shape = 'u32[144,128]{1,0:T(1,128)}', space=vmem, size = 0x12000, scoped, tag = 'internal scratch']
  %s0 = inlined_call_operand.hbm [shape: f32[2,128,128], index: 0, kind: input, shape index: {}]
  %s1 = inlined_call_operand.hbm [shape: f32[1,128,128], index: 1, kind: input, shape index: {}]
  %s2 = inlined_call_operand.hbm [shape: f32[2,128,128], index: 2, kind: input, shape index: {}]
  %s3 = inlined_call_operand.hbm [shape: f32[2,1,128,128], index: 3, kind: output, shape index: {}]
  %s4 = sld [smem:[#allocation0]]
  $region57: #{tpu_custom_call.1} parent=0
    _
  %s6 = ssub.s32 1, %s4
  %s7 = scalar_select 0, %s6, %s4
  $region1: #{tpu_custom_call.1} parent=0
    #allocation2 [shape = 'u8[131072]{0}', space=vmem, size = 0x20000, scoped, tag = 'input window, operand 0']
    #allocation3 [shape = 's32[2]{0}', space=sflag, size = 0x8, scoped, tag = 'scoped memory for tpu_custom_call.1']
    #allocation4 [shape = 's32[2]{0}', space=sflag, size = 0x8, scoped, tag = 'scoped memory for tpu_custom_call.1']
    #allocation5 [shape = 'u8[65536]{0}', space=vmem, size = 0x10000, scoped, tag = 'input window, operand 1, single buffered']
    #allocation6 [shape = 's32[1]{0}', space=sflag, size = 0x4, scoped, tag = 'scoped memory for tpu_custom_call.1']
    #allocation7 [shape = 'u8[131072]{0}', space=vmem, size = 0x20000, scoped, tag = 'input window, operand 2']
    #allocation8 [shape = 'u8[131072]{0}', space=vmem, size = 0x20000, scoped, tag = 'output window, operand 0']
    %8 = vsyncpa [#allocation3], 0
    %s9 = scalar_lea.sflag [#allocation3], 1
    %10 = vsyncpa %s9, 0
    %11 = vsyncpa [#allocation6], 0
    %12 = vsyncpa [#allocation4], 0
    %s13 = scalar_lea.sflag [#allocation4], 1
    %14 = vsyncpa %s13, 0
    loop: start=0, step=1, limit=4
    $region2: #{tpu_custom_call.1} parent=1 // loop_pre_header
      _
    $region3: #{tpu_custom_call.1} parent=1 // loop_header
      %s16 = sphi 0, %s20
      %p17 = scmp.ge.s32.totalorder %s16, 4
      %s23 = sphi 0, %s42
      %s24 = sphi 0, %s38
      %s25 = sphi 0, %s34
      %s26 = sphi 0, %s23
      %s27 = sphi 0, %s24
      %s28 = sphi 0, %s25
      %s29 = sphi 0, %s26
      %s30 = sphi 0, %s27
      %s31 = sphi 0, %s28
      %s47 = sphi 0, %s49
      %s50 = sphi 0, %s47
      %s51 = sphi 0, %s50
      %s67 = sphi 0, %s51
      %s73 = sphi 0, %s75
      %s76 = sphi 0, %s73
      %s77 = sphi 0, %s76
      %s93 = sphi 0, %s77
      %s99 = sphi 0, %s101
      %s102 = sphi 0, %s99
      %s103 = sphi 0, %s102
      %s119 = sphi 0, %s103
      %s129 = sphi 0, %s131
      %s132 = sphi 0, %s129
      %s133 = sphi 0, %s132
      %s149 = sphi 0, %s133
    $region4: #{tpu_custom_call.1} parent=1 // loop_header_branch
      %19 = sbr.rel (%p17) target = $region8
    $region5: #{tpu_custom_call.1} parent=1 // loop_body
      %s21 = ssub.s32 %s16, 1
      %s22 = ssub.s32 %s16, 2
      %s32 = sadd.s32 1, %s25
      %p33 = scmp.ge.s32.totalorder %s32, 1
      %s34 = scalar_select %p33, 0, %s32
      %s35 = sadd.s32 1, %s24
      %s36 = scalar_select %p33, %s35, %s24
      %p37 = scmp.ge.s32.totalorder %s36, 2
      %s38 = scalar_select %p37, 0, %s36
      %s39 = sadd.s32 1, %s23
      %s40 = scalar_select %p37, %s39, %s23
      %p41 = scmp.ge.s32.totalorder %s40, 1
      %s42 = scalar_select %p41, 0, %s40
      %s43 = ssub.s32 %s24, %s38
      %s44 = ssub.s32 %s25, %s34
      %s45 = sor.u32 %s43, %s44
      %p46 = scmp.eq.s32.totalorder %s45, 0
      %s48 = sadd.s32 %s47, 1
      %s49 = scalar_select %p46, %s47, %s48
      %p52 = pneg %p46
      %p53 = scmp.eq.s32.totalorder %s16, 1
      %p54 = por %p52, %p53
      %p55 = scmp.ne.s32.totalorder %s47, %s50
      %p56 = scmp.eq.s32.totalorder %s16, 0
      %p57 = por %p55, %p56
      %p58 = scmp.ne.s32.totalorder %s47, %s50
      %p59 = scmp.eq.s32.totalorder %s21, 1
      %p60 = por %p58, %p59
      %p61 = scmp.ne.s32.totalorder %s50, %s51
      %p62 = scmp.eq.s32.totalorder %s21, 0
      %p63 = por %p61, %p62
      %p64 = scmp.ne.s32.totalorder %s50, %s51
      %p65 = scmp.eq.s32.totalorder %s22, 1
      %p66 = por %p64, %p65
      %p68 = scmp.ne.s32.totalorder %s51, %s67
      %p69 = scmp.eq.s32.totalorder %s22, 0
      %p70 = por %p68, %p69
      %s71 = ssub.s32 %s23, %s42
      %p72 = scmp.eq.s32.totalorder %s71, 0
      %s74 = sadd.s32 %s73, 1
      %s75 = scalar_select %p72, %s73, %s74
      %p78 = pneg %p72
      %p79 = scmp.eq.s32.totalorder %s16, 1
      %p80 = por %p78, %p79
      %p81 = scmp.ne.s32.totalorder %s73, %s76
      %p82 = scmp.eq.s32.totalorder %s16, 0
      %p83 = por %p81, %p82
      %p84 = scmp.ne.s32.totalorder %s73, %s76
      %p85 = scmp.eq.s32.totalorder %s21, 1
      %p86 = por %p84, %p85
      %p87 = scmp.ne.s32.totalorder %s76, %s77
      %p88 = scmp.eq.s32.totalorder %s21, 0
      %p89 = por %p87, %p88
      %p90 = scmp.ne.s32.totalorder %s76, %s77
      %p91 = scmp.eq.s32.totalorder %s22, 1
      %p92 = por %p90, %p91
      %p94 = scmp.ne.s32.totalorder %s77, %s93
      %p95 = scmp.eq.s32.totalorder %s22, 0
      %p96 = por %p94, %p95
      %s97 = ssub.s32 %s24, %s38
      %p98 = scmp.eq.s32.totalorder %s97, 0
      %s100 = sadd.s32 %s99, 1
      %s101 = scalar_select %p98, %s99, %s100
      %p104 = pneg %p98
      %p105 = scmp.eq.s32.totalorder %s16, 1
      %p106 = por %p104, %p105
      %p107 = scmp.ne.s32.totalorder %s99, %s102
      %p108 = scmp.eq.s32.totalorder %s16, 0
      %p109 = por %p107, %p108
      %p110 = scmp.ne.s32.totalorder %s99, %s102
      %p111 = scmp.eq.s32.totalorder %s21, 1
      %p112 = por %p110, %p111
      %p113 = scmp.ne.s32.totalorder %s102, %s103
      %p114 = scmp.eq.s32.totalorder %s21, 0
      %p115 = por %p113, %p114
      %p116 = scmp.ne.s32.totalorder %s102, %s103
      %p117 = scmp.eq.s32.totalorder %s22, 1
      %p118 = por %p116, %p117
      %p120 = scmp.ne.s32.totalorder %s103, %s119
      %p121 = scmp.eq.s32.totalorder %s22, 0
      %p122 = por %p120, %p121
      %s123 = ssub.s32 %s24, %s38
      %s124 = ssub.s32 %s23, %s42
      %s125 = sor.u32 %s123, %s124
      %s126 = ssub.s32 %s25, %s34
      %s127 = sor.u32 %s125, %s126
      %p128 = scmp.eq.s32.totalorder %s127, 0
      %s130 = sadd.s32 %s129, 1
      %s131 = scalar_select %p128, %s129, %s130
      %p134 = pneg %p128
      %p135 = scmp.eq.s32.totalorder %s16, 1
      %p136 = por %p134, %p135
      %p137 = scmp.ne.s32.totalorder %s129, %s132
      %p138 = scmp.eq.s32.totalorder %s16, 0
      %p139 = por %p137, %p138
      %p140 = scmp.ne.s32.totalorder %s129, %s132
      %p141 = scmp.eq.s32.totalorder %s21, 1
      %p142 = por %p140, %p141
      %p143 = scmp.ne.s32.totalorder %s132, %s133
      %p144 = scmp.eq.s32.totalorder %s21, 0
      %p145 = por %p143, %p144
      %p146 = scmp.ne.s32.totalorder %s132, %s133
      %p147 = scmp.eq.s32.totalorder %s22, 1
      %p148 = por %p146, %p147
      %p150 = scmp.ne.s32.totalorder %s133, %s149
      %p151 = scmp.eq.s32.totalorder %s22, 0
      %p152 = por %p150, %p151
      %p153 = scmp.le.s32.totalorder 1, %s16
      %p154 = scmp.lt.s32.totalorder %s16, 3
      %p155 = pnand %p153, %p154
      %p156 = pneg %p155
      // Predicated region
      $region9: #{tpu_custom_call.1} parent=5 // pred_check
        _
      $region10: #{tpu_custom_call.1} parent=5 // pred_check_branch
        %158 = sbr.rel (%p155) target = $region12
      $region11: #{tpu_custom_call.1} parent=5 // pred_region
        %s159 = ssub.s32 %s16, 1
        // Predicated region
        $region13: #{tpu_custom_call.1} parent=11 // pred_check
          %p160 = pneg %p89
        $region14: #{tpu_custom_call.1} parent=11 // pred_check_branch
          %162 = sbr.rel (%p160) target = $region16
        $region15: #{tpu_custom_call.1} parent=11 // pred_region
          %s164 = ssub.s32 2048, 2048
          %165 = vsyncadd [#allocation6], %s164
          %s166 = smul.addr %s26, 16
          %s167 = smul.addr %s166, 128
          %s168 = scalar_lea.hbm %s1, %s167
          %s169 = sshll.u32 [#allocation5], 4
          %s170 = int_to_ptr.vmem [resolvable:$true] %s169
          %175 = dma.hbm_to_vmem [thread:$0]  %s168, 2048, %s170, [#allocation6], 128, 128, 8
        $region16: #{tpu_custom_call.1} parent=11 // pred_fallthru
          _
      $region12: #{tpu_custom_call.1} parent=5 // pred_fallthru
        _
      %p176 = scmp.lt.s32.totalorder %s16, 2
      // Predicated region
      $region17: #{tpu_custom_call.1} parent=5 // pred_check
        %p177 = pneg %p176
      $region18: #{tpu_custom_call.1} parent=5 // pred_check_branch
        %179 = sbr.rel (%p177) target = $region20
      $region19: #{tpu_custom_call.1} parent=5 // pred_region
        // Predicated region
        $region21: #{tpu_custom_call.1} parent=19 // pred_check
          %p180 = pneg %p57
        $region22: #{tpu_custom_call.1} parent=19 // pred_check_branch
          %182 = sbr.rel (%p180) target = $region24
        $region23: #{tpu_custom_call.1} parent=19 // pred_region
          %s183 = sand.u32 %s16, 1
          %s184 = scalar_lea.sflag [#allocation3], %s183
          %s185 = sand.u32 %s47, 1
          %s186 = smul.addr %s185, 128
          %s187 = scalar_lea.vmem [#allocation2], %s186
          %s188 = smul.u32 16, %s25
          %s190 = ssub.s32 2048, 2048
          %191 = vsyncadd %s184, %s190
          %s192 = smul.addr %s24, 16
          %s193 = sadd.s32 %s188, %s192
          %s194 = smul.addr %s193, 128
          %s195 = scalar_lea.hbm %s0, %s194
          %s196 = sshll.u32 %s187, 4
          %s197 = int_to_ptr.vmem [resolvable:$true] %s196
          %202 = dma.hbm_to_vmem [thread:$0]  %s195, 2048, %s197, %s184, 128, 128, 8
        $region24: #{tpu_custom_call.1} parent=19 // pred_fallthru
          _
        // Predicated region
        $region25: #{tpu_custom_call.1} parent=19 // pred_check
          %p203 = pneg %p109
        $region26: #{tpu_custom_call.1} parent=19 // pred_check_branch
          %205 = sbr.rel (%p203) target = $region28
        $region27: #{tpu_custom_call.1} parent=19 // pred_region
          %s206 = sand.u32 %s16, 1
          %s207 = scalar_lea.sflag [#allocation3], %s206
          %s208 = sand.u32 %s99, 1
          %s209 = smul.addr %s208, 128
          %s210 = scalar_lea.vmem [#allocation7], %s209
          %s212 = ssub.s32 2048, 2048
          %213 = vsyncadd %s207, %s212
          %s214 = smul.addr %s24, 16
          %s215 = smul.addr %s214, 128
          %s216 = scalar_lea.hbm %s2, %s215
          %s217 = sshll.u32 %s210, 4
          %s218 = int_to_ptr.vmem [resolvable:$true] %s217
          %223 = dma.hbm_to_vmem [thread:$0]  %s216, 2048, %s218, %s207, 128, 128, 8
        $region28: #{tpu_custom_call.1} parent=19 // pred_fallthru
          _
      $region20: #{tpu_custom_call.1} parent=5 // pred_fallthru
        _
      %p224 = scmp.le.s32.totalorder 1, %s16
      %p225 = scmp.lt.s32.totalorder %s16, 3
      %p226 = pnand %p224, %p225
      %p227 = pneg %p226
      // Predicated region
      $region29: #{tpu_custom_call.1} parent=5 // pred_check
        _
      $region30: #{tpu_custom_call.1} parent=5 // pred_check_branch
        %229 = sbr.rel (%p226) target = $region32
      $region31: #{tpu_custom_call.1} parent=5 // pred_region
        %s230 = ssub.s32 %s16, 1
        %s231 = sand.u32 %s21, 1
        %s232 = scalar_lea.sflag [#allocation3], %s231
        %s233 = sand.u32 %s50, 1
        %s234 = smul.addr %s233, 128
        %s235 = scalar_lea.vmem [#allocation2], %s234
        // Predicated region
        $region33: #{tpu_custom_call.1} parent=31 // pred_check
          %p236 = pneg %p63
        $region34: #{tpu_custom_call.1} parent=31 // pred_check_branch
          %238 = sbr.rel (%p236) target = $region36
        $region35: #{tpu_custom_call.1} parent=31 // pred_region
          %239 = dma.done %s232, 2048
        $region36: #{tpu_custom_call.1} parent=31 // pred_fallthru
          _
        // Predicated region
        $region37: #{tpu_custom_call.1} parent=31 // pred_check
          %p240 = pneg %p89
        $region38: #{tpu_custom_call.1} parent=31 // pred_check_branch
          %242 = sbr.rel (%p240) target = $region40
        $region39: #{tpu_custom_call.1} parent=31 // pred_region
          %243 = dma.done [#allocation6], 2048
        $region40: #{tpu_custom_call.1} parent=31 // pred_fallthru
          _
        %s244 = sand.u32 %s21, 1
        %s245 = scalar_lea.sflag [#allocation3], %s244
        %s246 = sand.u32 %s102, 1
        %s247 = smul.addr %s246, 128
        %s248 = scalar_lea.vmem [#allocation7], %s247
        // Predicated region
        $region41: #{tpu_custom_call.1} parent=31 // pred_check
          %p249 = pneg %p115
        $region42: #{tpu_custom_call.1} parent=31 // pred_check_branch
          %251 = sbr.rel (%p249) target = $region44
        $region43: #{tpu_custom_call.1} parent=31 // pred_region
          %252 = dma.done %s245, 2048
        $region44: #{tpu_custom_call.1} parent=31 // pred_fallthru
          _
        %s253 = sand.u32 %s21, 1
        %s254 = scalar_lea.sflag [#allocation3], %s253
        %s255 = sand.u32 %s50, 1
        %s256 = smul.addr %s255, 128
        %s257 = scalar_lea.vmem [#allocation2], %s256
        %p258 = pneg %p63
        %p259 = pneg %p60
        %p260 = pneg %p89
        %p261 = pneg %p86
        %s262 = sand.u32 %s21, 1
        %s263 = scalar_lea.sflag [#allocation3], %s262
        %s264 = sand.u32 %s102, 1
        %s265 = smul.addr %s264, 128
        %s266 = scalar_lea.vmem [#allocation7], %s265
        %p267 = pneg %p115
        %p268 = pneg %p112
        %p269 = pneg %p145
        %p270 = pneg %p142
        %s271 = sand.u32 %s132, 1
        %s272 = scalar_lea.sflag [#allocation4], %s271
        %s273 = sand.u32 %s132, 1
        %s274 = smul.addr %s273, 128
        %s275 = scalar_lea.vmem [#allocation8], %s274
        %s276 = smul.u32 16, %s28
        %s277 = smul.u32 16, %s28
        %v278 = vld [vmem:[%s235] sm:$0xff]
        %v279 = vld [vmem:[%s235 + $0x8] sm:$0xff]
        %v280 = vld [vmem:[%s235 + $0x10] sm:$0xff]
        %v281 = vld [vmem:[%s235 + $0x18] sm:$0xff]
        %v282 = vld [vmem:[%s235 + $0x20] sm:$0xff]
        %v283 = vld [vmem:[%s235 + $0x28] sm:$0xff]
        %v284 = vld [vmem:[%s235 + $0x30] sm:$0xff]
        %v285 = vld [vmem:[%s235 + $0x38] sm:$0xff]
        %v286 = vld [vmem:[%s235 + $0x40] sm:$0xff]
        %v287 = vld [vmem:[%s235 + $0x48] sm:$0xff]
        %v288 = vld [vmem:[%s235 + $0x50] sm:$0xff]
        %v289 = vld [vmem:[%s235 + $0x58] sm:$0xff]
        %v290 = vld [vmem:[%s235 + $0x60] sm:$0xff]
        %v291 = vld [vmem:[%s235 + $0x68] sm:$0xff]
        %v292 = vld [vmem:[%s235 + $0x70] sm:$0xff]
        %v293 = vld [vmem:[%s235 + $0x78] sm:$0xff]
        %v294 = vld [vmem:[#allocation5] sm:$0xff]
        %v295 = vld [vmem:[#allocation5 + $0x8] sm:$0xff]
        %v296 = vld [vmem:[#allocation5 + $0x10] sm:$0xff]
        %v297 = vld [vmem:[#allocation5 + $0x18] sm:$0xff]
        %v298 = vld [vmem:[#allocation5 + $0x20] sm:$0xff]
        %v299 = vld [vmem:[#allocation5 + $0x28] sm:$0xff]
        %v300 = vld [vmem:[#allocation5 + $0x30] sm:$0xff]
        %v301 = vld [vmem:[#allocation5 + $0x38] sm:$0xff]
        %v302 = vld [vmem:[#allocation5 + $0x40] sm:$0xff]
        %v303 = vld [vmem:[#allocation5 + $0x48] sm:$0xff]
        %v304 = vld [vmem:[#allocation5 + $0x50] sm:$0xff]
        %v305 = vld [vmem:[#allocation5 + $0x58] sm:$0xff]
        %v306 = vld [vmem:[#allocation5 + $0x60] sm:$0xff]
        %v307 = vld [vmem:[#allocation5 + $0x68] sm:$0xff]
        %v308 = vld [vmem:[#allocation5 + $0x70] sm:$0xff]
        %v309 = vld [vmem:[#allocation5 + $0x78] sm:$0xff]
        %310 = vmatprep.subr.mxu0 0.0
        %311 = vmatpush1.msra.mxu0 %v294
        %312 = vmatprep.subr.mxu0 0.0
        %313 = vmatpush1.msra.mxu0 %v295
        %314 = vmatprep.subr.mxu0 0.0
        %315 = vmatpush1.msra.mxu0 %v296
        %316 = vmatprep.subr.mxu0 0.0
        %317 = vmatpush1.msra.mxu0 %v297
        %318 = vmatprep.subr.mxu0 0.0
        %319 = vmatpush1.msra.mxu0 %v298
        %320 = vmatprep.subr.mxu0 0.0
        %321 = vmatpush1.msra.mxu0 %v299
        %322 = vmatprep.subr.mxu0 0.0
        %323 = vmatpush1.msra.mxu0 %v300
        %324 = vmatprep.subr.mxu0 0.0
        %325 = vmatpush1.msra.mxu0 %v301
        %326 = vmatprep.subr.mxu0 0.0
        %327 = vmatpush1.msra.mxu0 %v302
        %328 = vmatprep.subr.mxu0 0.0
        %329 = vmatpush1.msra.mxu0 %v303
        %330 = vmatprep.subr.mxu0 0.0
        %331 = vmatpush1.msra.mxu0 %v304
        %332 = vmatprep.subr.mxu0 0.0
        %333 = vmatpush1.msra.mxu0 %v305
        %334 = vmatprep.subr.mxu0 0.0
        %335 = vmatpush1.msra.mxu0 %v306
        %336 = vmatprep.subr.mxu0 0.0
        %337 = vmatpush1.msra.mxu0 %v307
        %338 = vmatprep.subr.mxu0 0.0
        %339 = vmatpush1.msra.mxu0 %v308
        %340 = vmatprep.subr.mxu0 0.0
        %341 = vmatpush1.msra.mxu0 %v309
        %342 = vmatprep.subr.mxu0 0.0
        %343 = vmatpush1.msra.mxu0 0.0
        %344 = vmatprep.subr.mxu0 0.0
        %345 = vmatpush1.msra.mxu0 0.0
        %346 = vmatprep.subr.mxu0 0.0
        %347 = vmatpush1.msra.mxu0 0.0
        %348 = vmatprep.subr.mxu0 0.0
        %349 = vmatpush1.msra.mxu0 0.0
        %350 = vmatprep.subr.mxu0 0.0
        %351 = vmatpush1.msra.mxu0 0.0
        %352 = vmatprep.subr.mxu0 0.0
        %353 = vmatpush1.msra.mxu0 0.0
        %354 = vmatprep.subr.mxu0 0.0
        %355 = vmatpush1.msra.mxu0 0.0
        %356 = vmatprep.subr.mxu0 0.0
        %357 = vmatpush1.msra.mxu0 0.0
        %358 = vmatprep.subr.mxu0 0.0
        %359 = vmatpush1.msra.mxu0 0.0
        %360 = vmatprep.subr.mxu0 0.0
        %361 = vmatpush1.msra.mxu0 0.0
        %362 = vmatprep.subr.mxu0 0.0
        %363 = vmatpush1.msra.mxu0 0.0
        %364 = vmatprep.subr.mxu0 0.0
        %365 = vmatpush1.msra.mxu0 0.0
        %366 = vmatprep.subr.mxu0 0.0
        %367 = vmatpush1.msra.mxu0 0.0
        %368 = vmatprep.subr.mxu0 0.0
        %369 = vmatpush1.msra.mxu0 0.0
        %370 = vmatprep.subr.mxu0 0.0
        %371 = vmatpush1.msra.mxu0 0.0
        %372 = vmatprep.subr.mxu0 0.0
        %373 = vmatpush1.msra.mxu0 0.0
        %374 = vmatprep.mubr.f32.mxu0 0.0
        %375 = vmatmul.mubr.f32.gmra.mrb[0].mxu0 %v278
        %v376 = vpop.f32.mrb[0].mxu0
        %v377 = vadd.f32 0.0, %v376
        %v378 = vpop.f32.mrb[0].mxu0
        %379 = vmatprep.mubr.f32.mxu0 0.0
        %380 = vmatmul.mubr.f32.gmra.mrb[0].mxu0 %v279
        %v381 = vpop.f32.mrb[0].mxu0
        %v382 = vadd.f32 0.0, %v381
        %v383 = vpop.f32.mrb[0].mxu0
        %384 = vmatprep.mubr.f32.mxu0 0.0
        %385 = vmatmul.mubr.f32.gmra.mrb[0].mxu0 %v280
        %v386 = vpop.f32.mrb[0].mxu0
        %v387 = vadd.f32 0.0, %v386
        %v388 = vpop.f32.mrb[0].mxu0
        %389 = vmatprep.mubr.f32.mxu0 0.0
        %390 = vmatmul.mubr.f32.gmra.mrb[0].mxu0 %v281
        %v391 = vpop.f32.mrb[0].mxu0
        %v392 = vadd.f32 0.0, %v391
        %v393 = vpop.f32.mrb[0].mxu0
        %394 = vmatprep.mubr.f32.mxu0 0.0
        %395 = vmatmul.mubr.f32.gmra.mrb[0].mxu0 %v282
        %v396 = vpop.f32.mrb[0].mxu0
        %v397 = vadd.f32 0.0, %v396
        %v398 = vpop.f32.mrb[0].mxu0
        %399 = vmatprep.mubr.f32.mxu0 0.0
        %400 = vmatmul.mubr.f32.gmra.mrb[0].mxu0 %v283
        %v401 = vpop.f32.mrb[0].mxu0
        %v402 = vadd.f32 0.0, %v401
        %v403 = vpop.f32.mrb[0].mxu0
        %404 = vmatprep.mubr.f32.mxu0 0.0
        %405 = vmatmul.mubr.f32.gmra.mrb[0].mxu0 %v284
        %v406 = vpop.f32.mrb[0].mxu0
        %v407 = vadd.f32 0.0, %v406
        %v408 = vpop.f32.mrb[0].mxu0
        %409 = vmatprep.mubr.f32.mxu0 0.0
        %410 = vmatmul.mubr.f32.gmra.mrb[0].mxu0 %v285
        %v411 = vpop.f32.mrb[0].mxu0
        %v412 = vadd.f32 0.0, %v411
        %v413 = vpop.f32.mrb[0].mxu0
        %414 = vmatprep.mubr.f32.mxu0 0.0
        %415 = vmatmul.mubr.f32.gmra.mrb[0].mxu0 %v286
        %v416 = vpop.f32.mrb[0].mxu0
        %v417 = vadd.f32 0.0, %v416
        %v418 = vpop.f32.mrb[0].mxu0
        %419 = vmatprep.mubr.f32.mxu0 0.0
        %420 = vmatmul.mubr.f32.gmra.mrb[0].mxu0 %v287
        %v421 = vpop.f32.mrb[0].mxu0
        %v422 = vadd.f32 0.0, %v421
        %v423 = vpop.f32.mrb[0].mxu0
        %424 = vmatprep.mubr.f32.mxu0 0.0
        %425 = vmatmul.mubr.f32.gmra.mrb[0].mxu0 %v288
        %v426 = vpop.f32.mrb[0].mxu0
        %v427 = vadd.f32 0.0, %v426
        %v428 = vpop.f32.mrb[0].mxu0
        %429 = vmatprep.mubr.f32.mxu0 0.0
        %430 = vmatmul.mubr.f32.gmra.mrb[0].mxu0 %v289
        %v431 = vpop.f32.mrb[0].mxu0
        %v432 = vadd.f32 0.0, %v431
        %v433 = vpop.f32.mrb[0].mxu0
        %434 = vmatprep.mubr.f32.mxu0 0.0
        %435 = vmatmul.mubr.f32.gmra.mrb[0].mxu0 %v290
        %v436 = vpop.f32.mrb[0].mxu0
        %v437 = vadd.f32 0.0, %v436
        %v438 = vpop.f32.mrb[0].mxu0
        %439 = vmatprep.mubr.f32.mxu0 0.0
        %440 = vmatmul.mubr.f32.gmra.mrb[0].mxu0 %v291
        %v441 = vpop.f32.mrb[0].mxu0
        %v442 = vadd.f32 0.0, %v441
        %v443 = vpop.f32.mrb[0].mxu0
        %444 = vmatprep.mubr.f32.mxu0 0.0
        %445 = vmatmul.mubr.f32.gmra.mrb[0].mxu0 %v292
        %v446 = vpop.f32.mrb[0].mxu0
        %v447 = vadd.f32 0.0, %v446
        %v448 = vpop.f32.mrb[0].mxu0
        %449 = vmatprep.mubr.f32.mxu0 0.0
        %450 = vmatmul.mubr.f32.gmra.mrb[0].mxu0 %v293
        %v451 = vpop.f32.mrb[0].mxu0
        %v452 = vadd.f32 0.0, %v451
        %v453 = vpop.f32.mrb[0].mxu0
        %454 = vdwg.mxu0
        %v455 = vld [vmem:[%s248] sm:$0xff]
        %v456 = vld [vmem:[%s248 + $0x8] sm:$0xff]
        %v457 = vld [vmem:[%s248 + $0x10] sm:$0xff]
        %v458 = vld [vmem:[%s248 + $0x18] sm:$0xff]
        %v459 = vld [vmem:[%s248 + $0x20] sm:$0xff]
        %v460 = vld [vmem:[%s248 + $0x28] sm:$0xff]
        %v461 = vld [vmem:[%s248 + $0x30] sm:$0xff]
        %v462 = vld [vmem:[%s248 + $0x38] sm:$0xff]
        %v463 = vld [vmem:[%s248 + $0x40] sm:$0xff]
        %v464 = vld [vmem:[%s248 + $0x48] sm:$0xff]
        %v465 = vld [vmem:[%s248 + $0x50] sm:$0xff]
        %v466 = vld [vmem:[%s248 + $0x58] sm:$0xff]
        %v467 = vld [vmem:[%s248 + $0x60] sm:$0xff]
        %v468 = vld [vmem:[%s248 + $0x68] sm:$0xff]
        %v469 = vld [vmem:[%s248 + $0x70] sm:$0xff]
        %v470 = vld [vmem:[%s248 + $0x78] sm:$0xff]
        %471 = vmatprep.subr.mxu0 0.0
        %472 = vmatpush1.xpose.msra.mxu0 %v455
        %473 = vmatprep.subr.mxu0 0.0
        %474 = vmatpush1.xpose.msra.mxu0 %v456
        %475 = vmatprep.subr.mxu0 0.0
        %476 = vmatpush1.xpose.msra.mxu0 %v457
        %477 = vmatprep.subr.mxu0 0.0
        %478 = vmatpush1.xpose.msra.mxu0 %v458
        %479 = vmatprep.subr.mxu0 0.0
        %480 = vmatpush1.xpose.msra.mxu0 %v459
        %481 = vmatprep.subr.mxu0 0.0
        %482 = vmatpush1.xpose.msra.mxu0 %v460
        %483 = vmatprep.subr.mxu0 0.0
        %484 = vmatpush1.xpose.msra.mxu0 %v461
        %485 = vmatprep.subr.mxu0 0.0
        %486 = vmatpush1.xpose.msra.mxu0 %v462
        %487 = vmatprep.subr.mxu0 0.0
        %488 = vmatpush1.xpose.msra.mxu0 %v463
        %489 = vmatprep.subr.mxu0 0.0
        %490 = vmatpush1.xpose.msra.mxu0 %v464
        %491 = vmatprep.subr.mxu0 0.0
        %492 = vmatpush1.xpose.msra.mxu0 %v465
        %493 = vmatprep.subr.mxu0 0.0
        %494 = vmatpush1.xpose.msra.mxu0 %v466
        %495 = vmatprep.subr.mxu0 0.0
        %496 = vmatpush1.xpose.msra.mxu0 %v467
        %497 = vmatprep.subr.mxu0 0.0
        %498 = vmatpush1.xpose.msra.mxu0 %v468
        %499 = vmatprep.subr.mxu0 0.0
        %500 = vmatpush1.xpose.msra.mxu0 %v469
        %501 = vmatprep.subr.mxu0 0.0
        %502 = vmatpush1.xpose.msra.mxu0 %v470
        %503 = vmatprep.subr.mxu0 0.0
        %504 = vmatpush1.xpose.msra.mxu0 0.0
        %505 = vmatprep.subr.mxu0 0.0
        %506 = vmatpush1.xpose.msra.mxu0 0.0
        %507 = vmatprep.subr.mxu0 0.0
        %508 = vmatpush1.xpose.msra.mxu0 0.0
        %509 = vmatprep.subr.mxu0 0.0
        %510 = vmatpush1.xpose.msra.mxu0 0.0
        %511 = vmatprep.subr.mxu0 0.0
        %512 = vmatpush1.xpose.msra.mxu0 0.0
        %513 = vmatprep.subr.mxu0 0.0
        %514 = vmatpush1.xpose.msra.mxu0 0.0
        %515 = vmatprep.subr.mxu0 0.0
        %516 = vmatpush1.xpose.msra.mxu0 0.0
        %517 = vmatprep.subr.mxu0 0.0
        %518 = vmatpush1.xpose.msra.mxu0 0.0
        %519 = vmatprep.subr.mxu0 0.0
        %520 = vmatpush1.xpose.msra.mxu0 0.0
        %521 = vmatprep.subr.mxu0 0.0
        %522 = vmatpush1.xpose.msra.mxu0 0.0
        %523 = vmatprep.subr.mxu0 0.0
        %524 = vmatpush1.xpose.msra.mxu0 0.0
        %525 = vmatprep.subr.mxu0 0.0
        %526 = vmatpush1.xpose.msra.mxu0 0.0
        %527 = vmatprep.subr.mxu0 0.0
        %528 = vmatpush1.xpose.msra.mxu0 0.0
        %529 = vmatprep.subr.mxu0 0.0
        %530 = vmatpush1.xpose.msra.mxu0 0.0
        %531 = vmatprep.subr.mxu0 0.0
        %532 = vmatpush1.xpose.msra.mxu0 0.0
        %533 = vmatprep.subr.mxu0 0.0
        %534 = vmatpush1.xpose.msra.mxu0 0.0
        %535 = vmatprep.mubr.f32.mxu0 0.0
        %536 = vmatmul.mubr.f32.gmra.mrb[0].mxu0 %v377
        %v537 = vpop.f32.mrb[0].mxu0
        %v538 = vadd.f32 0.0, %v537
        %v539 = vpop.f32.mrb[0].mxu0
        %540 = vmatprep.mubr.f32.mxu0 0.0
        %541 = vmatmul.mubr.f32.gmra.mrb[0].mxu0 %v382
        %v542 = vpop.f32.mrb[0].mxu0
        %v543 = vadd.f32 0.0, %v542
        %v544 = vpop.f32.mrb[0].mxu0
        %545 = vmatprep.mubr.f32.mxu0 0.0
        %546 = vmatmul.mubr.f32.gmra.mrb[0].mxu0 %v387
        %v547 = vpop.f32.mrb[0].mxu0
        %v548 = vadd.f32 0.0, %v547
        %v549 = vpop.f32.mrb[0].mxu0
        %550 = vmatprep.mubr.f32.mxu0 0.0
        %551 = vmatmul.mubr.f32.gmra.mrb[0].mxu0 %v392
        %v552 = vpop.f32.mrb[0].mxu0
        %v553 = vadd.f32 0.0, %v552
        %v554 = vpop.f32.mrb[0].mxu0
        %555 = vmatprep.mubr.f32.mxu0 0.0
        %556 = vmatmul.mubr.f32.gmra.mrb[0].mxu0 %v397
        %v557 = vpop.f32.mrb[0].mxu0
        %v558 = vadd.f32 0.0, %v557
        %v559 = vpop.f32.mrb[0].mxu0
        %560 = vmatprep.mubr.f32.mxu0 0.0
        %561 = vmatmul.mubr.f32.gmra.mrb[0].mxu0 %v402
        %v562 = vpop.f32.mrb[0].mxu0
        %v563 = vadd.f32 0.0, %v562
        %v564 = vpop.f32.mrb[0].mxu0
        %565 = vmatprep.mubr.f32.mxu0 0.0
        %566 = vmatmul.mubr.f32.gmra.mrb[0].mxu0 %v407
        %v567 = vpop.f32.mrb[0].mxu0
        %v568 = vadd.f32 0.0, %v567
        %v569 = vpop.f32.mrb[0].mxu0
        %570 = vmatprep.mubr.f32.mxu0 0.0
        %571 = vmatmul.mubr.f32.gmra.mrb[0].mxu0 %v412
        %v572 = vpop.f32.mrb[0].mxu0
        %v573 = vadd.f32 0.0, %v572
        %v574 = vpop.f32.mrb[0].mxu0
        %575 = vmatprep.mubr.f32.mxu0 0.0
        %576 = vmatmul.mubr.f32.gmra.mrb[0].mxu0 %v417
        %v577 = vpop.f32.mrb[0].mxu0
        %v578 = vadd.f32 0.0, %v577
        %v579 = vpop.f32.mrb[0].mxu0
        %580 = vmatprep.mubr.f32.mxu0 0.0
        %581 = vmatmul.mubr.f32.gmra.mrb[0].mxu0 %v422
        %v582 = vpop.f32.mrb[0].mxu0
        %v583 = vadd.f32 0.0, %v582
        %v584 = vpop.f32.mrb[0].mxu0
        %585 = vmatprep.mubr.f32.mxu0 0.0
        %586 = vmatmul.mubr.f32.gmra.mrb[0].mxu0 %v427
        %v587 = vpop.f32.mrb[0].mxu0
        %v588 = vadd.f32 0.0, %v587
        %v589 = vpop.f32.mrb[0].mxu0
        %590 = vmatprep.mubr.f32.mxu0 0.0
        %591 = vmatmul.mubr.f32.gmra.mrb[0].mxu0 %v432
        %v592 = vpop.f32.mrb[0].mxu0
        %v593 = vadd.f32 0.0, %v592
        %v594 = vpop.f32.mrb[0].mxu0
        %595 = vmatprep.mubr.f32.mxu0 0.0
        %596 = vmatmul.mubr.f32.gmra.mrb[0].mxu0 %v437
        %v597 = vpop.f32.mrb[0].mxu0
        %v598 = vadd.f32 0.0, %v597
        %v599 = vpop.f32.mrb[0].mxu0
        %600 = vmatprep.mubr.f32.mxu0 0.0
        %601 = vmatmul.mubr.f32.gmra.mrb[0].mxu0 %v442
        %v602 = vpop.f32.mrb[0].mxu0
        %v603 = vadd.f32 0.0, %v602
        %v604 = vpop.f32.mrb[0].mxu0
        %605 = vmatprep.mubr.f32.mxu0 0.0
        %606 = vmatmul.mubr.f32.gmra.mrb[0].mxu0 %v447
        %v607 = vpop.f32.mrb[0].mxu0
        %v608 = vadd.f32 0.0, %v607
        %v609 = vpop.f32.mrb[0].mxu0
        %610 = vmatprep.mubr.f32.mxu0 0.0
        %611 = vmatmul.mubr.f32.gmra.mrb[0].mxu0 %v452
        %v612 = vpop.f32.mrb[0].mxu0
        %v613 = vadd.f32 0.0, %v612
        %v614 = vpop.f32.mrb[0].mxu0
        %615 = vdwg.mxu0
        %616 = vst [vmem:[%s275] sm:$0xff] %v538
        %617 = vst [vmem:[%s275 + $0x8] sm:$0xff] %v543
        %618 = vst [vmem:[%s275 + $0x10] sm:$0xff] %v548
        %619 = vst [vmem:[%s275 + $0x18] sm:$0xff] %v553
        %620 = vst [vmem:[%s275 + $0x20] sm:$0xff] %v558
        %621 = vst [vmem:[%s275 + $0x28] sm:$0xff] %v563
        %622 = vst [vmem:[%s275 + $0x30] sm:$0xff] %v568
        %623 = vst [vmem:[%s275 + $0x38] sm:$0xff] %v573
        %624 = vst [vmem:[%s275 + $0x40] sm:$0xff] %v578
        %625 = vst [vmem:[%s275 + $0x48] sm:$0xff] %v583
        %626 = vst [vmem:[%s275 + $0x50] sm:$0xff] %v588
        %627 = vst [vmem:[%s275 + $0x58] sm:$0xff] %v593
        %628 = vst [vmem:[%s275 + $0x60] sm:$0xff] %v598
        %629 = vst [vmem:[%s275 + $0x68] sm:$0xff] %v603
        %630 = vst [vmem:[%s275 + $0x70] sm:$0xff] %v608
        %631 = vst [vmem:[%s275 + $0x78] sm:$0xff] %v613
        %s632 = sand.u32 %s132, 1
        %s633 = scalar_lea.sflag [#allocation4], %s632
        %s634 = sand.u32 %s132, 1
        %s635 = smul.addr %s634, 128
        %s636 = scalar_lea.vmem [#allocation8], %s635
        // Predicated region
        $region45: #{tpu_custom_call.1} parent=31 // pred_check
          %p637 = pneg %p142
        $region46: #{tpu_custom_call.1} parent=31 // pred_check_branch
          %639 = sbr.rel (%p637) target = $region48
        $region47: #{tpu_custom_call.1} parent=31 // pred_region
          %s640 = smul.u32 16, %s28
          %s642 = ssub.s32 2048, 2048
          %643 = vsyncadd %s633, %s642
          %s644 = smul.addr %s26, 16
          %s645 = sadd.s32 %s640, %s644
          %s646 = smul.addr %s27, 16
          %s647 = sadd.s32 %s645, %s646
          %s648 = smul.addr %s647, 128
          %s649 = scalar_lea.hbm %s3, %s648
          %s650 = sshll.u32 %s636, 4
          %s651 = int_to_ptr.vmem [resolvable:$true] %s650
          %656 = dma.vmem_to_hbm [thread:$0]  %s651, 2048, %s649, %s633, 128, 128, 8
        $region48: #{tpu_custom_call.1} parent=31 // pred_fallthru
          _
      $region32: #{tpu_custom_call.1} parent=5 // pred_fallthru
        _
      %p657 = scmp.le.s32.totalorder 2, %s16
      // Predicated region
      $region49: #{tpu_custom_call.1} parent=5 // pred_check
        %p658 = pneg %p657
      $region50: #{tpu_custom_call.1} parent=5 // pred_check_branch
        %660 = sbr.rel (%p658) target = $region52
      $region51: #{tpu_custom_call.1} parent=5 // pred_region
        %s661 = ssub.s32 %s16, 2
        // Predicated region
        $region53: #{tpu_custom_call.1} parent=51 // pred_check
          %p662 = pneg %p148
        $region54: #{tpu_custom_call.1} parent=51 // pred_check_branch
          %664 = sbr.rel (%p662) target = $region56
        $region55: #{tpu_custom_call.1} parent=51 // pred_region
          %s665 = sand.u32 %s133, 1
          %s666 = scalar_lea.sflag [#allocation4], %s665
          %s667 = sand.u32 %s133, 1
          %s668 = smul.addr %s667, 128
          %s669 = scalar_lea.vmem [#allocation8], %s668
          %670 = dma.done %s666, 2048
        $region56: #{tpu_custom_call.1} parent=51 // pred_fallthru
          _
      $region52: #{tpu_custom_call.1} parent=5 // pred_fallthru
        _
    $region6: #{tpu_custom_call.1} parent=1 // loop_footer
      %s20 = sadd.s32 1, %s16
    $region7: #{tpu_custom_call.1} parent=1 // loop_footer_branch
      %15 = sbr.rel target = $region3
    $region8: #{tpu_custom_call.1} parent=1 // loop_exit
      _
    %671 = vsyncpa [#allocation3], 1
    %s672 = scalar_lea.sflag [#allocation3], 1
    %673 = vsyncpa %s672, 1
    %674 = vsyncpa [#allocation6], 1
    %675 = vsyncpa [#allocation4], 1
    %s676 = scalar_lea.sflag [#allocation4], 1
    %677 = vsyncpa %s676, 1

</llo_original>
